<compile_context>
chip_gen: v6e
topology: v6e:2x2x1
jax: 0.10.0
libtpu: 0.0.40
codegen_flags: <defaults>
</compile_context>

<pallas_src>
import functools

import jax
import jax.numpy as jnp
from jax import lax
from jax.experimental import pallas as pl
from jax.experimental.pallas import tpu as pltpu


def _attention_layer_kernel(
    q_ref, k_ref, v_ref, kmask_ref, hmask_ref,
    wq_ref, bq_ref, wk_ref, bk_ref, wv_ref, bv_ref, wo_ref, bo_ref,
    o_ref, *, eps):
  nb, L, D = q_ref.shape
  _, S, _ = k_ref.shape
  HK = wq_ref.shape[1]
  HV = wv_ref.shape[1]

  # Flatten the NB batch elements into dense row slabs for the projections.
  q2 = q_ref[...].reshape(nb * L, D)
  k2 = k_ref[...].reshape(nb * S, D)
  v2 = v_ref[...].reshape(nb * S, D)
  kmask2 = kmask_ref[...].reshape(nb * S, 1)          # (rows, 1) float32

  # Input projections: MXU matmuls in the input dtype, f32 accumulation.
  Q = jnp.dot(q2, wq_ref[...], preferred_element_type=jnp.float32) + bq_ref[...]
  K = jnp.dot(k2, wk_ref[...], preferred_element_type=jnp.float32) + bk_ref[...]
  V = jnp.dot(v2, wv_ref[...], preferred_element_type=jnp.float32) + bv_ref[...]

  # phi(x) = elu(x) + 1; exp of the clamped value so no inf is ever produced.
  def phi(x):
    return jnp.where(x > 0, x + 1.0, jnp.exp(jnp.minimum(x, 0.0)))

  Qf = phi(Q)                                         # (nb*L, HK) f32
  Kf = phi(K) * kmask2                                # key-length mask applied

  Qf3 = Qf.reshape(nb, L, HK)
  Kf3 = Kf.reshape(nb, S, HK)
  V3 = V.reshape(nb, S, HV)
  hmask = hmask_ref[...]                              # (HK, HV) head-diag mask

  # Per-element KV and numerator. dot_general contracts axis 0 directly (no
  # explicit transpose); masking the cross-head blocks of the full (HK, HV)
  # matrix is equivalent to the per-head KV_h = phi(K)_h^T @ V_h but keeps all
  # matmuls lane-dense (no sub-128-lane head slices, no concatenate).
  num_rows = []
  for b in range(nb):                                 # static, small unroll
    kv_b = lax.dot_general(
        Kf3[b], V3[b], (((0,), (0,)), ((), ())),
        preferred_element_type=jnp.float32) * hmask   # (HK, HV)
    num_rows.append(
        jnp.dot(Qf3[b], kv_b, preferred_element_type=jnp.float32))  # (L, HV)
  num = jnp.concatenate(num_rows, axis=0)             # (nb*L, HV), sublane cat

  # Normalizer: per-head phi(Q) . sum_s phi(K). The key sum is hoisted (one
  # sublane reduce over the whole Kf slab); the head mask matmul broadcasts
  # each head's denominator across that head's dv output lanes.
  Ksum = jnp.sum(Kf3, axis=1)                         # (nb, HK)
  qk = (Qf3 * Ksum[:, None, :]).reshape(nb * L, HK)   # VPU multiply
  Zden = jnp.dot(qk, hmask, preferred_element_type=jnp.float32) + eps
  new_values = num * pl.reciprocal(Zden, approx=False)

  # Output projection on the full (nb*L, HV) slab.
  out = jnp.dot(new_values, wo_ref[...],
                preferred_element_type=jnp.float32) + bo_ref[...]
  o_ref[...] = out.reshape(nb, L, D).astype(o_ref.dtype)


def _pick_block_batch(N, L, S, target_rows=256):
  """Largest divisor of N whose block keeps ~target_rows MXU rows per slab."""
  per = max(L, S, 1)
  nb = max(1, min(N, max(1, target_rows // per)))
  while N % nb:
    nb -= 1
  return max(nb, 1)


def attention_layer(queries, keys, values, key_mask, params, *, n_heads,
                    eps=1e-6, block_n=None):
  """queries (N, L, D), keys/values (N, S, D), key_mask (N, S) float {0,1}."""
  N, L, D = queries.shape
  _, S, _ = keys.shape
  wq, bq, wk, bk, wv, bv, wo, bo = params
  HK = wq.shape[1]
  HV = wv.shape[1]
  d_keys = HK // n_heads
  d_values = HV // n_heads

  if block_n is None:
    block_n = _pick_block_batch(N, L, S)
  assert N % block_n == 0, "block_n must divide the batch size"

  # Wrapper-side glue (plain JAX): biases as (1, F), mask as (N, S, 1).
  bq2 = bq.reshape(1, HK)
  bk2 = bk.reshape(1, HK)
  bv2 = bv.reshape(1, HV)
  bo2 = bo.reshape(1, D)
  kmask3 = key_mask.reshape(N, S, 1).astype(jnp.float32)
  # TODO(synk): for very long S the (S, 1) mask block pads to 128 lanes and the
  # whole-S K/V blocks can exceed v7x's 64 MiB VMEM; an S-streamed grid axis
  # with VMEM-resident KV/Ksum accumulators would be needed for that regime.

  # Head block-diagonal mask (HK, HV): 1 where the row's head == column's head.
  row_head = jnp.repeat(jnp.arange(n_heads), d_keys)
  col_head = jnp.repeat(jnp.arange(n_heads), d_values)
  hmask = (row_head[:, None] == col_head[None, :]).astype(jnp.float32)

  kernel = functools.partial(_attention_layer_kernel, eps=eps)
  rep = lambda i: (0, 0)  # weights / biases / head mask: same block each step

  return pl.pallas_call(
      kernel,
      out_shape=jax.ShapeDtypeStruct((N, L, D), jnp.float32),
      grid=(N // block_n,),
      in_specs=[
          pl.BlockSpec((block_n, L, D), lambda i: (i, 0, 0)),   # queries
          pl.BlockSpec((block_n, S, D), lambda i: (i, 0, 0)),   # keys
          pl.BlockSpec((block_n, S, D), lambda i: (i, 0, 0)),   # values
          pl.BlockSpec((block_n, S, 1), lambda i: (i, 0, 0)),   # key mask
          pl.BlockSpec((HK, HV), rep),                          # head mask
          pl.BlockSpec((D, HK), rep),                           # Wq
          pl.BlockSpec((1, HK), rep),                           # bq
          pl.BlockSpec((D, HK), rep),                           # Wk
          pl.BlockSpec((1, HK), rep),                           # bk
          pl.BlockSpec((D, HV), rep),                           # Wv
          pl.BlockSpec((1, HV), rep),                           # bv
          pl.BlockSpec((HV, D), rep),                           # Wo
          pl.BlockSpec((1, D), rep),                            # bo
      ],
      out_specs=pl.BlockSpec((block_n, L, D), lambda i: (i, 0, 0)),
      compiler_params=pltpu.CompilerParams(
          dimension_semantics=("parallel",)),
  )(queries, keys, values, kmask3, hmask,
    wq, bq2, wk, bk2, wv, bv2, wo, bo2)


def _init_linear(key, fan_in, fan_out):
  # PyTorch-Linear-style init: U(-1/sqrt(fan_in), 1/sqrt(fan_in)).
  kw, kb = jax.random.split(key)
  bound = 1.0 / jnp.sqrt(fan_in)
  w = jax.random.uniform(kw, (fan_in, fan_out), jnp.float32, -bound, bound)
  b = jax.random.uniform(kb, (fan_out,), jnp.float32, -bound, bound)
  return w, b


def _reference(queries, keys, values, key_mask, params, n_heads, eps=1e-6):
  """Pure-JAX reference of the same forward pass."""
  wq, bq, wk, bk, wv, bv, wo, bo = params
  N, L, D = queries.shape
  _, S, _ = keys.shape
  HK = wq.shape[1]
  dk = HK // n_heads
  dv = wv.shape[1] // n_heads

  def phi(x):
    return jnp.where(x > 0, x + 1.0, jnp.exp(jnp.minimum(x, 0.0)))

  Q = phi(queries @ wq + bq).reshape(N, L, n_heads, dk)
  K = phi(keys @ wk + bk).reshape(N, S, n_heads, dk)
  K = K * key_mask[:, :, None, None]
  V = (values @ wv + bv).reshape(N, S, n_heads, dv)

  KV = jnp.einsum("nshd,nshm->nhdm", K, V)
  Z = 1.0 / (jnp.einsum("nlhd,nhd->nlh", Q, K.sum(axis=1)) + eps)
  out = jnp.einsum("nlhd,nhdm,nlh->nlhm", Q, KV, Z).reshape(N, L, -1)
  return out @ wo + bo


if __name__ == "__main__":
  # Small shapes: N=2 batch, L=8 query len, S=8 key len, D=32 model dim, H=4.
  N, L, S, D, H = 2, 8, 8, 32, 4
  dk = D // H
  dv = D // H

  key = jax.random.PRNGKey(0)
  kq, kk, kv, kw1, kw2, kw3, kw4 = jax.random.split(key, 7)

  queries = jax.random.normal(kq, (N, L, D), jnp.float32)
  keys = jax.random.normal(kk, (N, S, D), jnp.float32)
  values = jax.random.normal(kv, (N, S, D), jnp.float32)

  # key_lengths mask: first batch all valid, second batch only 6 valid keys.
  key_mask = jnp.stack([
      jnp.ones((S,), jnp.float32),
      (jnp.arange(S) < 6).astype(jnp.float32),
  ])

  wq, bq = _init_linear(kw1, D, dk * H)
  wk, bk = _init_linear(kw2, D, dk * H)
  wv, bv = _init_linear(kw3, D, dv * H)
  wo, bo = _init_linear(kw4, dv * H, D)
  params = (wq, bq, wk, bk, wv, bv, wo, bo)

  out = attention_layer(queries, keys, values, key_mask, params, n_heads=H)
  out = jax.block_until_ready(out)

  ref = _reference(queries, keys, values, key_mask, params, H)
  assert out.shape == (N, L, D)
  assert jnp.allclose(out, ref, atol=2e-4, rtol=2e-4), "mismatch vs reference"

  # TODO(synk): attn_mask (FullMask) and query_lengths are no-ops in linear
  # attention's forward, so they are not kernel inputs. A fused Wq|Wk|Wv
  # projection is not applicable since queries/keys/values are distinct inputs.
  print("KERNEL_OK")
</pallas_src>

<mosaic_0001>
module attributes {stable_mosaic.version = 11 : i64} {
  func.func @_attention_layer_kernel(%arg0: i32, %arg1: memref<2x8x32xf32, #tpu.memory_space<vmem>>, %arg2: memref<2x8x32xf32, #tpu.memory_space<vmem>>, %arg3: memref<2x8x32xf32, #tpu.memory_space<vmem>>, %arg4: memref<2x8x1xf32, #tpu.memory_space<vmem>>, %arg5: memref<32x32xf32, #tpu.memory_space<vmem>>, %arg6: memref<32x32xf32, #tpu.memory_space<vmem>>, %arg7: memref<1x32xf32, #tpu.memory_space<vmem>>, %arg8: memref<32x32xf32, #tpu.memory_space<vmem>>, %arg9: memref<1x32xf32, #tpu.memory_space<vmem>>, %arg10: memref<32x32xf32, #tpu.memory_space<vmem>>, %arg11: memref<1x32xf32, #tpu.memory_space<vmem>>, %arg12: memref<32x32xf32, #tpu.memory_space<vmem>>, %arg13: memref<1x32xf32, #tpu.memory_space<vmem>>, %arg14: memref<2x8x32xf32, #tpu.memory_space<vmem>>) attributes {dimension_semantics = [#tpu.dimension_semantics<parallel>], iteration_bounds = array<i64: 1>, scalar_prefetch = 0 : i64, scratch_operands = 0 : i64, tpu.core_type = #tpu.core_type<tc>, window_params = [{transform_indices = @transform_0, window_bounds = array<i64: 2, 8, 32>}, {transform_indices = @transform_1, window_bounds = array<i64: 2, 8, 32>}, {transform_indices = @transform_2, window_bounds = array<i64: 2, 8, 32>}, {transform_indices = @transform_3, window_bounds = array<i64: 2, 8, 1>}, {pipeline_mode = #tpu.pipeline_mode<synchronous>, transform_indices = @transform_4, window_bounds = array<i64: 32, 32>}, {pipeline_mode = #tpu.pipeline_mode<synchronous>, transform_indices = @transform_5, window_bounds = array<i64: 32, 32>}, {pipeline_mode = #tpu.pipeline_mode<synchronous>, transform_indices = @transform_6, window_bounds = array<i64: 1, 32>}, {pipeline_mode = #tpu.pipeline_mode<synchronous>, transform_indices = @transform_7, window_bounds = array<i64: 32, 32>}, {pipeline_mode = #tpu.pipeline_mode<synchronous>, transform_indices = @transform_8, window_bounds = array<i64: 1, 32>}, {pipeline_mode = #tpu.pipeline_mode<synchronous>, transform_indices = @transform_9, window_bounds = array<i64: 32, 32>}, {pipeline_mode = #tpu.pipeline_mode<synchronous>, transform_indices = @transform_10, window_bounds = array<i64: 1, 32>}, {pipeline_mode = #tpu.pipeline_mode<synchronous>, transform_indices = @transform_11, window_bounds = array<i64: 32, 32>}, {pipeline_mode = #tpu.pipeline_mode<synchronous>, transform_indices = @transform_12, window_bounds = array<i64: 1, 32>}, {transform_indices = @transform_13, window_bounds = array<i64: 2, 8, 32>}]} {
    %c0 = arith.constant 0 : index
    %c0_0 = arith.constant 0 : index
    %c0_1 = arith.constant 0 : index
    %0 = vector.load %arg1[%c0, %c0_0, %c0_1] : memref<2x8x32xf32, #tpu.memory_space<vmem>>, vector<2x8x32xf32>
    %1 = vector.shape_cast %0 : vector<2x8x32xf32> to vector<16x32xf32>
    %c0_2 = arith.constant 0 : index
    %c0_3 = arith.constant 0 : index
    %c0_4 = arith.constant 0 : index
    %2 = vector.load %arg2[%c0_2, %c0_3, %c0_4] : memref<2x8x32xf32, #tpu.memory_space<vmem>>, vector<2x8x32xf32>
    %3 = vector.shape_cast %2 : vector<2x8x32xf32> to vector<16x32xf32>
    %c0_5 = arith.constant 0 : index
    %c0_6 = arith.constant 0 : index
    %c0_7 = arith.constant 0 : index
    %4 = vector.load %arg3[%c0_5, %c0_6, %c0_7] : memref<2x8x32xf32, #tpu.memory_space<vmem>>, vector<2x8x32xf32>
    %5 = vector.shape_cast %4 : vector<2x8x32xf32> to vector<16x32xf32>
    %c0_8 = arith.constant 0 : index
    %c0_9 = arith.constant 0 : index
    %c0_10 = arith.constant 0 : index
    %6 = vector.load %arg4[%c0_8, %c0_9, %c0_10] : memref<2x8x1xf32, #tpu.memory_space<vmem>>, vector<2x8x1xf32>
    %7 = vector.shape_cast %6 : vector<2x8x1xf32> to vector<16x1xf32>
    %c0_11 = arith.constant 0 : index
    %c0_12 = arith.constant 0 : index
    %8 = vector.load %arg6[%c0_11, %c0_12] : memref<32x32xf32, #tpu.memory_space<vmem>>, vector<32x32xf32>
    %cst = arith.constant dense<0.000000e+00> : vector<16x32xf32>
    %9 = tpu.matmul %1, %8, %cst {dimension_numbers = #tpu.dot_dimension_numbers<[1], [0], [0], [1], [0, 0, 1, 1], [], []>} : vector<16x32xf32>, vector<32x32xf32>, vector<16x32xf32> -> vector<16x32xf32>
    %c0_13 = arith.constant 0 : index
    %c0_14 = arith.constant 0 : index
    %10 = vector.load %arg7[%c0_13, %c0_14] : memref<1x32xf32, #tpu.memory_space<vmem>>, vector<1x32xf32>
    %11 = vector.broadcast %10 : vector<1x32xf32> to vector<16x32xf32>
    %12 = arith.addf %9, %11 : vector<16x32xf32>
    %c0_15 = arith.constant 0 : index
    %c0_16 = arith.constant 0 : index
    %13 = vector.load %arg8[%c0_15, %c0_16] : memref<32x32xf32, #tpu.memory_space<vmem>>, vector<32x32xf32>
    %cst_17 = arith.constant dense<0.000000e+00> : vector<16x32xf32>
    %14 = tpu.matmul %3, %13, %cst_17 {dimension_numbers = #tpu.dot_dimension_numbers<[1], [0], [0], [1], [0, 0, 1, 1], [], []>} : vector<16x32xf32>, vector<32x32xf32>, vector<16x32xf32> -> vector<16x32xf32>
    %c0_18 = arith.constant 0 : index
    %c0_19 = arith.constant 0 : index
    %15 = vector.load %arg9[%c0_18, %c0_19] : memref<1x32xf32, #tpu.memory_space<vmem>>, vector<1x32xf32>
    %16 = vector.broadcast %15 : vector<1x32xf32> to vector<16x32xf32>
    %17 = arith.addf %14, %16 : vector<16x32xf32>
    %c0_20 = arith.constant 0 : index
    %c0_21 = arith.constant 0 : index
    %18 = vector.load %arg10[%c0_20, %c0_21] : memref<32x32xf32, #tpu.memory_space<vmem>>, vector<32x32xf32>
    %cst_22 = arith.constant dense<0.000000e+00> : vector<16x32xf32>
    %19 = tpu.matmul %5, %18, %cst_22 {dimension_numbers = #tpu.dot_dimension_numbers<[1], [0], [0], [1], [0, 0, 1, 1], [], []>} : vector<16x32xf32>, vector<32x32xf32>, vector<16x32xf32> -> vector<16x32xf32>
    %c0_23 = arith.constant 0 : index
    %c0_24 = arith.constant 0 : index
    %20 = vector.load %arg11[%c0_23, %c0_24] : memref<1x32xf32, #tpu.memory_space<vmem>>, vector<1x32xf32>
    %21 = vector.broadcast %20 : vector<1x32xf32> to vector<16x32xf32>
    %22 = arith.addf %19, %21 : vector<16x32xf32>
    %cst_25 = arith.constant 0.000000e+00 : f32
    %23 = vector.broadcast %cst_25 : f32 to vector<16x32xf32>
    %24 = arith.cmpf ogt, %12, %23 : vector<16x32xf32>
    %cst_26 = arith.constant 1.000000e+00 : f32
    %25 = vector.broadcast %cst_26 : f32 to vector<16x32xf32>
    %26 = arith.addf %12, %25 : vector<16x32xf32>
    %cst_27 = arith.constant 0.000000e+00 : f32
    %27 = vector.broadcast %cst_27 : f32 to vector<16x32xf32>
    %28 = arith.minimumf %12, %27 : vector<16x32xf32>
    %29 = math.exp %28 : vector<16x32xf32>
    %30 = arith.select %24, %26, %29 : vector<16x32xi1>, vector<16x32xf32>
    %cst_28 = arith.constant 0.000000e+00 : f32
    %31 = vector.broadcast %cst_28 : f32 to vector<16x32xf32>
    %32 = arith.cmpf ogt, %17, %31 : vector<16x32xf32>
    %cst_29 = arith.constant 1.000000e+00 : f32
    %33 = vector.broadcast %cst_29 : f32 to vector<16x32xf32>
    %34 = arith.addf %17, %33 : vector<16x32xf32>
    %cst_30 = arith.constant 0.000000e+00 : f32
    %35 = vector.broadcast %cst_30 : f32 to vector<16x32xf32>
    %36 = arith.minimumf %17, %35 : vector<16x32xf32>
    %37 = math.exp %36 : vector<16x32xf32>
    %38 = arith.select %32, %34, %37 : vector<16x32xi1>, vector<16x32xf32>
    %39 = vector.broadcast %7 : vector<16x1xf32> to vector<16x32xf32>
    %40 = arith.mulf %38, %39 : vector<16x32xf32>
    %41 = vector.shape_cast %30 : vector<16x32xf32> to vector<2x8x32xf32>
    %42 = vector.shape_cast %40 : vector<16x32xf32> to vector<2x8x32xf32>
    %43 = vector.shape_cast %22 : vector<16x32xf32> to vector<2x8x32xf32>
    %c0_31 = arith.constant 0 : index
    %c0_32 = arith.constant 0 : index
    %44 = vector.load %arg5[%c0_31, %c0_32] : memref<32x32xf32, #tpu.memory_space<vmem>>, vector<32x32xf32>
    %45 = vector.extract_strided_slice %42 {offsets = [0, 0, 0], sizes = [1, 8, 32], strides = [1, 1, 1]} : vector<2x8x32xf32> to vector<1x8x32xf32>
    %46 = vector.shape_cast %45 : vector<1x8x32xf32> to vector<8x32xf32>
    %47 = vector.extract_strided_slice %43 {offsets = [0, 0, 0], sizes = [1, 8, 32], strides = [1, 1, 1]} : vector<2x8x32xf32> to vector<1x8x32xf32>
    %48 = vector.shape_cast %47 : vector<1x8x32xf32> to vector<8x32xf32>
    %cst_33 = arith.constant dense<0.000000e+00> : vector<32x32xf32>
    %49 = tpu.matmul %46, %48, %cst_33 {dimension_numbers = #tpu.dot_dimension_numbers<[0], [0], [1], [1], [0, 1, 1, 1], [], []>} : vector<8x32xf32>, vector<8x32xf32>, vector<32x32xf32> -> vector<32x32xf32>
    %50 = arith.mulf %49, %44 : vector<32x32xf32>
    %51 = vector.extract_strided_slice %41 {offsets = [0, 0, 0], sizes = [1, 8, 32], strides = [1, 1, 1]} : vector<2x8x32xf32> to vector<1x8x32xf32>
    %52 = vector.shape_cast %51 : vector<1x8x32xf32> to vector<8x32xf32>
    %cst_34 = arith.constant dense<0.000000e+00> : vector<8x32xf32>
    %53 = tpu.matmul %52, %50, %cst_34 {dimension_numbers = #tpu.dot_dimension_numbers<[1], [0], [0], [1], [0, 0, 1, 1], [], []>} : vector<8x32xf32>, vector<32x32xf32>, vector<8x32xf32> -> vector<8x32xf32>
    %54 = vector.extract_strided_slice %42 {offsets = [1, 0, 0], sizes = [1, 8, 32], strides = [1, 1, 1]} : vector<2x8x32xf32> to vector<1x8x32xf32>
    %55 = vector.shape_cast %54 : vector<1x8x32xf32> to vector<8x32xf32>
    %56 = vector.extract_strided_slice %43 {offsets = [1, 0, 0], sizes = [1, 8, 32], strides = [1, 1, 1]} : vector<2x8x32xf32> to vector<1x8x32xf32>
    %57 = vector.shape_cast %56 : vector<1x8x32xf32> to vector<8x32xf32>
    %cst_35 = arith.constant dense<0.000000e+00> : vector<32x32xf32>
    %58 = tpu.matmul %55, %57, %cst_35 {dimension_numbers = #tpu.dot_dimension_numbers<[0], [0], [1], [1], [0, 1, 1, 1], [], []>} : vector<8x32xf32>, vector<8x32xf32>, vector<32x32xf32> -> vector<32x32xf32>
    %59 = arith.mulf %58, %44 : vector<32x32xf32>
    %60 = vector.extract_strided_slice %41 {offsets = [1, 0, 0], sizes = [1, 8, 32], strides = [1, 1, 1]} : vector<2x8x32xf32> to vector<1x8x32xf32>
    %61 = vector.shape_cast %60 : vector<1x8x32xf32> to vector<8x32xf32>
    %cst_36 = arith.constant dense<0.000000e+00> : vector<8x32xf32>
    %62 = tpu.matmul %61, %59, %cst_36 {dimension_numbers = #tpu.dot_dimension_numbers<[1], [0], [0], [1], [0, 0, 1, 1], [], []>} : vector<8x32xf32>, vector<32x32xf32>, vector<8x32xf32> -> vector<8x32xf32>
    %63 = tpu.concatenate %53, %62 in 0 : vector<8x32xf32>, vector<8x32xf32> -> vector<16x32xf32>
    %cst_37 = arith.constant dense<0.000000e+00> : vector<2x32xf32>
    %64 = vector.multi_reduction <add>, %42, %cst_37 [1] : vector<2x8x32xf32> to vector<2x32xf32>
    %65 = vector.shape_cast %64 : vector<2x32xf32> to vector<2x1x32xf32>
    %66 = vector.broadcast %65 : vector<2x1x32xf32> to vector<2x8x32xf32>
    %67 = arith.mulf %41, %66 : vector<2x8x32xf32>
    %68 = vector.shape_cast %67 : vector<2x8x32xf32> to vector<16x32xf32>
    %cst_38 = arith.constant dense<0.000000e+00> : vector<16x32xf32>
    %69 = tpu.matmul %68, %44, %cst_38 {dimension_numbers = #tpu.dot_dimension_numbers<[1], [0], [0], [1], [0, 0, 1, 1], [], []>} : vector<16x32xf32>, vector<32x32xf32>, vector<16x32xf32> -> vector<16x32xf32>
    %cst_39 = arith.constant 9.99999997E-7 : f32
    %70 = vector.broadcast %cst_39 : f32 to vector<16x32xf32>
    %71 = arith.addf %69, %70 : vector<16x32xf32>
    %72 = tpu.reciprocal %71 : vector<16x32xf32> -> vector<16x32xf32>
    %73 = arith.mulf %63, %72 : vector<16x32xf32>
    %c0_40 = arith.constant 0 : index
    %c0_41 = arith.constant 0 : index
    %74 = vector.load %arg12[%c0_40, %c0_41] : memref<32x32xf32, #tpu.memory_space<vmem>>, vector<32x32xf32>
    %cst_42 = arith.constant dense<0.000000e+00> : vector<16x32xf32>
    %75 = tpu.matmul %73, %74, %cst_42 {dimension_numbers = #tpu.dot_dimension_numbers<[1], [0], [0], [1], [0, 0, 1, 1], [], []>} : vector<16x32xf32>, vector<32x32xf32>, vector<16x32xf32> -> vector<16x32xf32>
    %c0_43 = arith.constant 0 : index
    %c0_44 = arith.constant 0 : index
    %76 = vector.load %arg13[%c0_43, %c0_44] : memref<1x32xf32, #tpu.memory_space<vmem>>, vector<1x32xf32>
    %77 = vector.broadcast %76 : vector<1x32xf32> to vector<16x32xf32>
    %78 = arith.addf %75, %77 : vector<16x32xf32>
    %79 = vector.shape_cast %78 : vector<16x32xf32> to vector<2x8x32xf32>
    %c0_45 = arith.constant 0 : index
    %c0_46 = arith.constant 0 : index
    %c0_47 = arith.constant 0 : index
    %80 = vector.load %arg14[%c0_45, %c0_46, %c0_47] : memref<2x8x32xf32, #tpu.memory_space<vmem>>, vector<2x8x32xf32>
    tpu.vector_store %arg14[%c0_45, %c0_46, %c0_47], %79 {strides = array<i32>} : memref<2x8x32xf32, #tpu.memory_space<vmem>>, vector<2x8x32xf32>,
    return
  }
  func.func @transform_0(%arg0: i32) -> (i32, i32, i32) {
    %c0_i32 = arith.constant 0 : i32
    %c0_i32_0 = arith.constant 0 : i32
    %c0_i32_1 = arith.constant 0 : i32
    return %arg0, %c0_i32, %c0_i32_0 : i32, i32, i32
  }
  func.func @transform_1(%arg0: i32) -> (i32, i32, i32) {
    %c0_i32 = arith.constant 0 : i32
    %c0_i32_0 = arith.constant 0 : i32
    %c0_i32_1 = arith.constant 0 : i32
    return %arg0, %c0_i32, %c0_i32_0 : i32, i32, i32
  }
  func.func @transform_2(%arg0: i32) -> (i32, i32, i32) {
    %c0_i32 = arith.constant 0 : i32
    %c0_i32_0 = arith.constant 0 : i32
    %c0_i32_1 = arith.constant 0 : i32
    return %arg0, %c0_i32, %c0_i32_0 : i32, i32, i32
  }
  func.func @transform_3(%arg0: i32) -> (i32, i32, i32) {
    %c0_i32 = arith.constant 0 : i32
    %c0_i32_0 = arith.constant 0 : i32
    %c0_i32_1 = arith.constant 0 : i32
    return %arg0, %c0_i32, %c0_i32_0 : i32, i32, i32
  }
  func.func @transform_4(%arg0: i32) -> (i32, i32) {
    %c0_i32 = arith.constant 0 : i32
    %c0_i32_0 = arith.constant 0 : i32
    %c0_i32_1 = arith.constant 0 : i32
    return %c0_i32, %c0_i32_0 : i32, i32
  }
  func.func @transform_5(%arg0: i32) -> (i32, i32) {
    %c0_i32 = arith.constant 0 : i32
    %c0_i32_0 = arith.constant 0 : i32
    %c0_i32_1 = arith.constant 0 : i32
    return %c0_i32, %c0_i32_0 : i32, i32
  }
  func.func @transform_6(%arg0: i32) -> (i32, i32) {
    %c0_i32 = arith.constant 0 : i32
    %c0_i32_0 = arith.constant 0 : i32
    %c0_i32_1 = arith.constant 0 : i32
    return %c0_i32, %c0_i32_0 : i32, i32
  }
  func.func @transform_7(%arg0: i32) -> (i32, i32) {
    %c0_i32 = arith.constant 0 : i32
    %c0_i32_0 = arith.constant 0 : i32
    %c0_i32_1 = arith.constant 0 : i32
    return %c0_i32, %c0_i32_0 : i32, i32
  }
  func.func @transform_8(%arg0: i32) -> (i32, i32) {
    %c0_i32 = arith.constant 0 : i32
    %c0_i32_0 = arith.constant 0 : i32
    %c0_i32_1 = arith.constant 0 : i32
    return %c0_i32, %c0_i32_0 : i32, i32
  }
  func.func @transform_9(%arg0: i32) -> (i32, i32) {
    %c0_i32 = arith.constant 0 : i32
    %c0_i32_0 = arith.constant 0 : i32
    %c0_i32_1 = arith.constant 0 : i32
    return %c0_i32, %c0_i32_0 : i32, i32
  }
  func.func @transform_10(%arg0: i32) -> (i32, i32) {
    %c0_i32 = arith.constant 0 : i32
    %c0_i32_0 = arith.constant 0 : i32
    %c0_i32_1 = arith.constant 0 : i32
    return %c0_i32, %c0_i32_0 : i32, i32
  }
  func.func @transform_11(%arg0: i32) -> (i32, i32) {
    %c0_i32 = arith.constant 0 : i32
    %c0_i32_0 = arith.constant 0 : i32
    %c0_i32_1 = arith.constant 0 : i32
    return %c0_i32, %c0_i32_0 : i32, i32
  }
  func.func @transform_12(%arg0: i32) -> (i32, i32) {
    %c0_i32 = arith.constant 0 : i32
    %c0_i32_0 = arith.constant 0 : i32
    %c0_i32_1 = arith.constant 0 : i32
    return %c0_i32, %c0_i32_0 : i32, i32
  }
  func.func @transform_13(%arg0: i32) -> (i32, i32, i32) {
    %c0_i32 = arith.constant 0 : i32
    %c0_i32_0 = arith.constant 0 : i32
    %c0_i32_1 = arith.constant 0 : i32
    return %arg0, %c0_i32, %c0_i32_0 : i32, i32, i32
  }
}

</mosaic_0001>

<llo_original>
// kernel: tpu_custom_call.1
$region0: #{tpu_custom_call.1}
  #allocation0 [shape = 'u32[]', space=smem, size = 0x4, offset = 0x4, fixed_abs, tag = 'smem constant byte address 0x4 - core index']
  #allocation1 [shape = 'u32[144,128]{1,0:T(1,128)}', space=vmem, size = 0x12000, scoped, tag = 'internal scratch']
  %s0 = inlined_call_operand.hbm [shape: f32[2,8,32], index: 0, kind: input, shape index: {}]
  %s1 = inlined_call_operand.hbm [shape: f32[2,8,32], index: 1, kind: input, shape index: {}]
  %s2 = inlined_call_operand.hbm [shape: f32[2,8,32], index: 2, kind: input, shape index: {}]
  %s3 = inlined_call_operand.vmem [shape: f32[2,8,1], index: 3, kind: input, shape index: {}]
  %s4 = inlined_call_operand.hbm [shape: f32[32,32], index: 4, kind: input, shape index: {}]
  %s5 = inlined_call_operand.hbm [shape: f32[32,32], index: 5, kind: input, shape index: {}]
  %s6 = inlined_call_operand.vmem [shape: f32[1,32], index: 6, kind: input, shape index: {}]
  %s7 = inlined_call_operand.hbm [shape: f32[32,32], index: 7, kind: input, shape index: {}]
  %s8 = inlined_call_operand.vmem [shape: f32[1,32], index: 8, kind: input, shape index: {}]
  %s9 = inlined_call_operand.vmem [shape: f32[32,32], index: 9, kind: input, shape index: {}]
  %s10 = inlined_call_operand.vmem [shape: f32[1,32], index: 10, kind: input, shape index: {}]
  %s11 = inlined_call_operand.hbm [shape: f32[32,32], index: 11, kind: input, shape index: {}]
  %s12 = inlined_call_operand.vmem [shape: f32[1,32], index: 12, kind: input, shape index: {}]
  %s13 = inlined_call_operand.hbm [shape: f32[2,8,32], index: 13, kind: output, shape index: {}]
  %s14 = sld [smem:[#allocation0]]
  $region90: #{tpu_custom_call.1} parent=0
    _
  %s16 = ssub.s32 1, %s14
  %s17 = scalar_select 0, %s16, %s14
  $region1: #{tpu_custom_call.1} parent=0
    #allocation2 [shape = 'u8[8192]{0}', space=vmem, size = 0x2000, scoped, tag = 'input window, operand 0, single buffered']
    #allocation3 [shape = 's32[1]{0}', space=sflag, size = 0x4, scoped, tag = 'scoped memory for tpu_custom_call.1']
    #allocation4 [shape = 's32[1]{0}', space=sflag, size = 0x4, scoped, tag = 'scoped memory for tpu_custom_call.1']
    #allocation5 [shape = 'u8[8192]{0}', space=vmem, size = 0x2000, scoped, tag = 'input window, operand 1, single buffered']
    #allocation6 [shape = 's32[1]{0}', space=sflag, size = 0x4, scoped, tag = 'scoped memory for tpu_custom_call.1']
    #allocation7 [shape = 'u8[8192]{0}', space=vmem, size = 0x2000, scoped, tag = 'input window, operand 2, single buffered']
    #allocation8 [shape = 'u8[16384]{0}', space=vmem, size = 0x4000, scoped, tag = 'input window, operand 4, single buffered']
    #allocation9 [shape = 's32[1]{0}', space=sflag, size = 0x4, scoped, tag = 'scoped memory for tpu_custom_call.1']
    #allocation10 [shape = 'u8[16384]{0}', space=vmem, size = 0x4000, scoped, tag = 'input window, operand 5, single buffered']
    #allocation11 [shape = 'u8[16384]{0}', space=vmem, size = 0x4000, scoped, tag = 'input window, operand 7, single buffered']
    #allocation12 [shape = 's32[1]{0}', space=sflag, size = 0x4, scoped, tag = 'scoped memory for tpu_custom_call.1']
    #allocation13 [shape = 'u8[16384]{0}', space=vmem, size = 0x4000, scoped, tag = 'input window, operand 11, single buffered']
    #allocation14 [shape = 'u8[8192]{0}', space=vmem, size = 0x2000, scoped, tag = 'output window, operand 0, single buffered']
    %18 = vsyncpa [#allocation3], 0
    %19 = vsyncpa [#allocation6], 0
    %20 = vsyncpa [#allocation9], 0
    %21 = vsyncpa [#allocation12], 0
    %22 = vsyncpa [#allocation4], 0
    // Predicated region
    $region2: #{tpu_custom_call.1} parent=1 // pred_check
      _
    $region3: #{tpu_custom_call.1} parent=1 // pred_check_branch
      %24 = sbr.rel (0) target = $region5
    $region4: #{tpu_custom_call.1} parent=1 // pred_region
      %s26 = ssub.s32 256, 256
      %27 = vsyncadd [#allocation3], %s26
      %s28 = sshll.u32 [#allocation2], 4
      %s29 = int_to_ptr.vmem [resolvable:$true] %s28
      %34 = dma.hbm_to_vmem [thread:$0]  %s0, 256, %s29, [#allocation3], 128, 128, 8
    $region5: #{tpu_custom_call.1} parent=1 // pred_fallthru
      _
    // Predicated region
    $region6: #{tpu_custom_call.1} parent=1 // pred_check
      _
    $region7: #{tpu_custom_call.1} parent=1 // pred_check_branch
      %36 = sbr.rel (0) target = $region9
    $region8: #{tpu_custom_call.1} parent=1 // pred_region
      %s38 = ssub.s32 256, 256
      %39 = vsyncadd [#allocation6], %s38
      %s40 = sshll.u32 [#allocation5], 4
      %s41 = int_to_ptr.vmem [resolvable:$true] %s40
      %46 = dma.hbm_to_vmem [thread:$0]  %s1, 256, %s41, [#allocation6], 128, 128, 8
    $region9: #{tpu_custom_call.1} parent=1 // pred_fallthru
      _
    // Predicated region
    $region10: #{tpu_custom_call.1} parent=1 // pred_check
      _
    $region11: #{tpu_custom_call.1} parent=1 // pred_check_branch
      %48 = sbr.rel (0) target = $region13
    $region12: #{tpu_custom_call.1} parent=1 // pred_region
      %s50 = ssub.s32 256, 256
      %51 = vsyncadd [#allocation6], %s50
      %s52 = sshll.u32 [#allocation7], 4
      %s53 = int_to_ptr.vmem [resolvable:$true] %s52
      %58 = dma.hbm_to_vmem [thread:$0]  %s2, 256, %s53, [#allocation6], 128, 128, 8
    $region13: #{tpu_custom_call.1} parent=1 // pred_fallthru
      _
    // Predicated region
    $region14: #{tpu_custom_call.1} parent=1 // pred_check
      _
    $region15: #{tpu_custom_call.1} parent=1 // pred_check_branch
      %60 = sbr.rel (0) target = $region17
    $region16: #{tpu_custom_call.1} parent=1 // pred_region
      _
    $region17: #{tpu_custom_call.1} parent=1 // pred_fallthru
      _
    // Predicated region
    $region18: #{tpu_custom_call.1} parent=1 // pred_check
      _
    $region19: #{tpu_custom_call.1} parent=1 // pred_check_branch
      %62 = sbr.rel (0) target = $region21
    $region20: #{tpu_custom_call.1} parent=1 // pred_region
      %s64 = ssub.s32 512, 512
      %65 = vsyncadd [#allocation9], %s64
      %s66 = sshll.u32 [#allocation8], 4
      %s67 = int_to_ptr.vmem [resolvable:$true] %s66
      %72 = dma.hbm_to_vmem [thread:$0]  %s4, 512, %s67, [#allocation9], 128, 128, 8
    $region21: #{tpu_custom_call.1} parent=1 // pred_fallthru
      _
    // Predicated region
    $region22: #{tpu_custom_call.1} parent=1 // pred_check
      _
    $region23: #{tpu_custom_call.1} parent=1 // pred_check_branch
      %74 = sbr.rel (0) target = $region25
    $region24: #{tpu_custom_call.1} parent=1 // pred_region
      %s76 = ssub.s32 512, 512
      %77 = vsyncadd [#allocation9], %s76
      %s78 = sshll.u32 [#allocation10], 4
      %s79 = int_to_ptr.vmem [resolvable:$true] %s78
      %84 = dma.hbm_to_vmem [thread:$0]  %s5, 512, %s79, [#allocation9], 128, 128, 8
    $region25: #{tpu_custom_call.1} parent=1 // pred_fallthru
      _
    // Predicated region
    $region26: #{tpu_custom_call.1} parent=1 // pred_check
      _
    $region27: #{tpu_custom_call.1} parent=1 // pred_check_branch
      %86 = sbr.rel (0) target = $region29
    $region28: #{tpu_custom_call.1} parent=1 // pred_region
      _
    $region29: #{tpu_custom_call.1} parent=1 // pred_fallthru
      _
    // Predicated region
    $region30: #{tpu_custom_call.1} parent=1 // pred_check
      _
    $region31: #{tpu_custom_call.1} parent=1 // pred_check_branch
      %88 = sbr.rel (0) target = $region33
    $region32: #{tpu_custom_call.1} parent=1 // pred_region
      %s90 = ssub.s32 512, 512
      %91 = vsyncadd [#allocation12], %s90
      %s92 = sshll.u32 [#allocation11], 4
      %s93 = int_to_ptr.vmem [resolvable:$true] %s92
      %98 = dma.hbm_to_vmem [thread:$0]  %s7, 512, %s93, [#allocation12], 128, 128, 8
    $region33: #{tpu_custom_call.1} parent=1 // pred_fallthru
      _
    // Predicated region
    $region34: #{tpu_custom_call.1} parent=1 // pred_check
      _
    $region35: #{tpu_custom_call.1} parent=1 // pred_check_branch
      %100 = sbr.rel (0) target = $region37
    $region36: #{tpu_custom_call.1} parent=1 // pred_region
      _
    $region37: #{tpu_custom_call.1} parent=1 // pred_fallthru
      _
    // Predicated region
    $region38: #{tpu_custom_call.1} parent=1 // pred_check
      _
    $region39: #{tpu_custom_call.1} parent=1 // pred_check_branch
      %102 = sbr.rel (0) target = $region41
    $region40: #{tpu_custom_call.1} parent=1 // pred_region
      _
    $region41: #{tpu_custom_call.1} parent=1 // pred_fallthru
      _
    // Predicated region
    $region42: #{tpu_custom_call.1} parent=1 // pred_check
      _
    $region43: #{tpu_custom_call.1} parent=1 // pred_check_branch
      %104 = sbr.rel (0) target = $region45
    $region44: #{tpu_custom_call.1} parent=1 // pred_region
      _
    $region45: #{tpu_custom_call.1} parent=1 // pred_fallthru
      _
    // Predicated region
    $region46: #{tpu_custom_call.1} parent=1 // pred_check
      _
    $region47: #{tpu_custom_call.1} parent=1 // pred_check_branch
      %106 = sbr.rel (0) target = $region49
    $region48: #{tpu_custom_call.1} parent=1 // pred_region
      %s108 = ssub.s32 512, 512
      %109 = vsyncadd [#allocation12], %s108
      %s110 = sshll.u32 [#allocation13], 4
      %s111 = int_to_ptr.vmem [resolvable:$true] %s110
      %116 = dma.hbm_to_vmem [thread:$0]  %s11, 512, %s111, [#allocation12], 128, 128, 8
    $region49: #{tpu_custom_call.1} parent=1 // pred_fallthru
      _
    // Predicated region
    $region50: #{tpu_custom_call.1} parent=1 // pred_check
      _
    $region51: #{tpu_custom_call.1} parent=1 // pred_check_branch
      %118 = sbr.rel (0) target = $region53
    $region52: #{tpu_custom_call.1} parent=1 // pred_region
      _
    $region53: #{tpu_custom_call.1} parent=1 // pred_fallthru
      _
    // Predicated region
    $region54: #{tpu_custom_call.1} parent=1 // pred_check
      _
    $region55: #{tpu_custom_call.1} parent=1 // pred_check_branch
      %120 = sbr.rel (0) target = $region57
    $region56: #{tpu_custom_call.1} parent=1 // pred_region
      %121 = dma.done [#allocation3], 256
    $region57: #{tpu_custom_call.1} parent=1 // pred_fallthru
      _
    // Predicated region
    $region58: #{tpu_custom_call.1} parent=1 // pred_check
      _
    $region59: #{tpu_custom_call.1} parent=1 // pred_check_branch
      %123 = sbr.rel (0) target = $region61
    $region60: #{tpu_custom_call.1} parent=1 // pred_region
      %124 = dma.done [#allocation6], 256
    $region61: #{tpu_custom_call.1} parent=1 // pred_fallthru
      _
    // Predicated region
    $region62: #{tpu_custom_call.1} parent=1 // pred_check
      _
    $region63: #{tpu_custom_call.1} parent=1 // pred_check_branch
      %126 = sbr.rel (0) target = $region65
    $region64: #{tpu_custom_call.1} parent=1 // pred_region
      %127 = dma.done [#allocation6], 256
    $region65: #{tpu_custom_call.1} parent=1 // pred_fallthru
      _
    // Predicated region
    $region66: #{tpu_custom_call.1} parent=1 // pred_check
      _
    $region67: #{tpu_custom_call.1} parent=1 // pred_check_branch
      %129 = sbr.rel (0) target = $region69
    $region68: #{tpu_custom_call.1} parent=1 // pred_region
      %130 = dma.done [#allocation9], 512
    $region69: #{tpu_custom_call.1} parent=1 // pred_fallthru
      _
    // Predicated region
    $region70: #{tpu_custom_call.1} parent=1 // pred_check
      _
    $region71: #{tpu_custom_call.1} parent=1 // pred_check_branch
      %132 = sbr.rel (0) target = $region73
    $region72: #{tpu_custom_call.1} parent=1 // pred_region
      %133 = dma.done [#allocation9], 512
    $region73: #{tpu_custom_call.1} parent=1 // pred_fallthru
      _
    // Predicated region
    $region74: #{tpu_custom_call.1} parent=1 // pred_check
      _
    $region75: #{tpu_custom_call.1} parent=1 // pred_check_branch
      %135 = sbr.rel (0) target = $region77
    $region76: #{tpu_custom_call.1} parent=1 // pred_region
      %136 = dma.done [#allocation12], 512
    $region77: #{tpu_custom_call.1} parent=1 // pred_fallthru
      _
    // Predicated region
    $region78: #{tpu_custom_call.1} parent=1 // pred_check
      _
    $region79: #{tpu_custom_call.1} parent=1 // pred_check_branch
      %138 = sbr.rel (0) target = $region81
    $region80: #{tpu_custom_call.1} parent=1 // pred_region
      %139 = dma.done [#allocation12], 512
    $region81: #{tpu_custom_call.1} parent=1 // pred_fallthru
      _
    %v140 = vld [vmem:[#allocation2] sm:$0xff]
    %v141 = vld [vmem:[#allocation2 + $0x8] sm:$0xff]
    %v142 = vld [vmem:[#allocation5] sm:$0xff]
    %v143 = vld [vmem:[#allocation5 + $0x8] sm:$0xff]
    %v144 = vld [vmem:[#allocation7] sm:$0xff]
    %v145 = vld [vmem:[#allocation7 + $0x8] sm:$0xff]
    %v146 = vld [vmem:[%s3] sm:$0xff]
    %v147 = vld [vmem:[%s3 + $0x8] sm:$0xff]
    %v148 = vld [vmem:[#allocation10] sm:$0xff]
    %v149 = vld [vmem:[#allocation10 + $0x8] sm:$0xff]
    %v150 = vld [vmem:[#allocation10 + $0x10] sm:$0xff]
    %v151 = vld [vmem:[#allocation10 + $0x18] sm:$0xff]
    %v152 = vld [vmem:[%s6] sm:$0x1]
    %v154 = vlaneseq
    %v155 = vshrl.u32 %v154, 7
    %v156 = vsub.s32 0, %v155
    %v157 = vrot.slane %v152, %v156
    %vm159 = vcmask 261120
    %v161 = vsel %vm159, %v140, 0
    %v164 = vsel %vm159, %v141, 0
    %166 = vmatprep.subr.mxu0 0.0
    %167 = vmatpush1.msra.mxu0 0.0
    %168 = vmatprep.subr.mxu0 0.0
    %169 = vmatpush1.msra.mxu0 0.0
    %170 = vmatprep.subr.mxu0 0.0
    %171 = vmatpush1.msra.mxu0 0.0
    %172 = vmatprep.subr.mxu0 0.0
    %173 = vmatpush1.msra.mxu0 0.0
    %174 = vmatprep.subr.mxu0 0.0
    %175 = vmatpush1.msra.mxu0 0.0
    %176 = vmatprep.subr.mxu0 0.0
    %177 = vmatpush1.msra.mxu0 0.0
    %178 = vmatprep.subr.mxu0 0.0
    %179 = vmatpush1.msra.mxu0 0.0
    %180 = vmatprep.subr.mxu0 0.0
    %181 = vmatpush1.msra.mxu0 0.0
    %182 = vmatprep.subr.mxu0 0.0
    %183 = vmatpush1.msra.mxu0 0.0
    %184 = vmatprep.subr.mxu0 0.0
    %185 = vmatpush1.msra.mxu0 0.0
    %186 = vmatprep.subr.mxu0 0.0
    %187 = vmatpush1.msra.mxu0 0.0
    %188 = vmatprep.subr.mxu0 0.0
    %189 = vmatpush1.msra.mxu0 0.0
    %190 = vmatprep.subr.mxu0 0.0
    %191 = vmatpush1.msra.mxu0 %v151
    %192 = vmatprep.subr.mxu0 0.0
    %193 = vmatpush1.msra.mxu0 %v150
    %194 = vmatprep.subr.mxu0 0.0
    %195 = vmatpush1.msra.mxu0 %v149
    %196 = vmatprep.subr.mxu0 0.0
    %197 = vmatpush1.msra.mxu0 %v148
    %198 = vmatprep.subr.mxu0 0.0
    %199 = vmatpush2.msra.mxu0 0.0
    %200 = vmatprep.subr.mxu0 0.0
    %201 = vmatpush2.msra.mxu0 0.0
    %202 = vmatprep.subr.mxu0 0.0
    %203 = vmatpush2.msra.mxu0 0.0
    %204 = vmatprep.subr.mxu0 0.0
    %205 = vmatpush2.msra.mxu0 0.0
    %206 = vmatprep.subr.mxu0 0.0
    %207 = vmatpush2.msra.mxu0 0.0
    %208 = vmatprep.subr.mxu0 0.0
    %209 = vmatpush2.msra.mxu0 0.0
    %210 = vmatprep.subr.mxu0 0.0
    %211 = vmatpush2.msra.mxu0 0.0
    %212 = vmatprep.subr.mxu0 0.0
    %213 = vmatpush2.msra.mxu0 0.0
    %214 = vmatprep.subr.mxu0 0.0
    %215 = vmatpush2.msra.mxu0 0.0
    %216 = vmatprep.subr.mxu0 0.0
    %217 = vmatpush2.msra.mxu0 0.0
    %218 = vmatprep.subr.mxu0 0.0
    %219 = vmatpush2.msra.mxu0 0.0
    %220 = vmatprep.subr.mxu0 0.0
    %221 = vmatpush2.msra.mxu0 0.0
    %222 = vmatprep.subr.mxu0 0.0
    %223 = vmatpush2.msra.mxu0 0.0
    %224 = vmatprep.subr.mxu0 0.0
    %225 = vmatpush2.msra.mxu0 0.0
    %226 = vmatprep.subr.mxu0 0.0
    %227 = vmatpush2.msra.mxu0 0.0
    %228 = vmatprep.subr.mxu0 0.0
    %229 = vmatpush2.msra.mxu0 0.0
    %230 = vmatprep.mubr.f32.mxu0 0.0
    %231 = vmatmul.mubr.f32.gmra.mxu0 %v161
    %v232 = vpop.f32.mrf.mxu0
    %v233 = vadd.f32 %v157, %v232
    %v234 = vpop.f32.mrf.mxu0
    %235 = vmatprep.mubr.f32.mxu0 0.0
    %236 = vmatmul.mubr.f32.gmra.mxu0 %v164
    %v237 = vpop.f32.mrf.mxu0
    %v238 = vadd.f32 %v157, %v237
    %v239 = vpop.f32.mrf.mxu0
    %240 = vdwg.mxu0
    %v241 = vld [vmem:[#allocation11] sm:$0xff]
    %v242 = vld [vmem:[#allocation11 + $0x8] sm:$0xff]
    %v243 = vld [vmem:[#allocation11 + $0x10] sm:$0xff]
    %v244 = vld [vmem:[#allocation11 + $0x18] sm:$0xff]
    %v245 = vld [vmem:[%s8] sm:$0x1]
    %v247 = vlaneseq
    %v248 = vshrl.u32 %v247, 7
    %v249 = vsub.s32 0, %v248
    %v250 = vrot.slane %v245, %v249
    %v253 = vsel %vm159, %v142, 0
    %v256 = vsel %vm159, %v143, 0
    %258 = vmatprep.subr.mxu0 0.0
    %259 = vmatpush1.msra.mxu0 0.0
    %260 = vmatprep.subr.mxu0 0.0
    %261 = vmatpush1.msra.mxu0 0.0
    %262 = vmatprep.subr.mxu0 0.0
    %263 = vmatpush1.msra.mxu0 0.0
    %264 = vmatprep.subr.mxu0 0.0
    %265 = vmatpush1.msra.mxu0 0.0
    %266 = vmatprep.subr.mxu0 0.0
    %267 = vmatpush1.msra.mxu0 0.0
    %268 = vmatprep.subr.mxu0 0.0
    %269 = vmatpush1.msra.mxu0 0.0
    %270 = vmatprep.subr.mxu0 0.0
    %271 = vmatpush1.msra.mxu0 0.0
    %272 = vmatprep.subr.mxu0 0.0
    %273 = vmatpush1.msra.mxu0 0.0
    %274 = vmatprep.subr.mxu0 0.0
    %275 = vmatpush1.msra.mxu0 0.0
    %276 = vmatprep.subr.mxu0 0.0
    %277 = vmatpush1.msra.mxu0 0.0
    %278 = vmatprep.subr.mxu0 0.0
    %279 = vmatpush1.msra.mxu0 0.0
    %280 = vmatprep.subr.mxu0 0.0
    %281 = vmatpush1.msra.mxu0 0.0
    %282 = vmatprep.subr.mxu0 0.0
    %283 = vmatpush1.msra.mxu0 %v244
    %284 = vmatprep.subr.mxu0 0.0
    %285 = vmatpush1.msra.mxu0 %v243
    %286 = vmatprep.subr.mxu0 0.0
    %287 = vmatpush1.msra.mxu0 %v242
    %288 = vmatprep.subr.mxu0 0.0
    %289 = vmatpush1.msra.mxu0 %v241
    %290 = vmatprep.subr.mxu0 0.0
    %291 = vmatpush2.msra.mxu0 0.0
    %292 = vmatprep.subr.mxu0 0.0
    %293 = vmatpush2.msra.mxu0 0.0
    %294 = vmatprep.subr.mxu0 0.0
    %295 = vmatpush2.msra.mxu0 0.0
    %296 = vmatprep.subr.mxu0 0.0
    %297 = vmatpush2.msra.mxu0 0.0
    %298 = vmatprep.subr.mxu0 0.0
    %299 = vmatpush2.msra.mxu0 0.0
    %300 = vmatprep.subr.mxu0 0.0
    %301 = vmatpush2.msra.mxu0 0.0
    %302 = vmatprep.subr.mxu0 0.0
    %303 = vmatpush2.msra.mxu0 0.0
    %304 = vmatprep.subr.mxu0 0.0
    %305 = vmatpush2.msra.mxu0 0.0
    %306 = vmatprep.subr.mxu0 0.0
    %307 = vmatpush2.msra.mxu0 0.0
    %308 = vmatprep.subr.mxu0 0.0
    %309 = vmatpush2.msra.mxu0 0.0
    %310 = vmatprep.subr.mxu0 0.0
    %311 = vmatpush2.msra.mxu0 0.0
    %312 = vmatprep.subr.mxu0 0.0
    %313 = vmatpush2.msra.mxu0 0.0
    %314 = vmatprep.subr.mxu0 0.0
    %315 = vmatpush2.msra.mxu0 0.0
    %316 = vmatprep.subr.mxu0 0.0
    %317 = vmatpush2.msra.mxu0 0.0
    %318 = vmatprep.subr.mxu0 0.0
    %319 = vmatpush2.msra.mxu0 0.0
    %320 = vmatprep.subr.mxu0 0.0
    %321 = vmatpush2.msra.mxu0 0.0
    %322 = vmatprep.mubr.f32.mxu0 0.0
    %323 = vmatmul.mubr.f32.gmra.mxu0 %v253
    %v324 = vpop.f32.mrf.mxu0
    %v325 = vadd.f32 %v250, %v324
    %v326 = vpop.f32.mrf.mxu0
    %327 = vmatprep.mubr.f32.mxu0 0.0
    %328 = vmatmul.mubr.f32.gmra.mxu0 %v256
    %v329 = vpop.f32.mrf.mxu0
    %v330 = vadd.f32 %v250, %v329
    %v331 = vpop.f32.mrf.mxu0
    %332 = vdwg.mxu0
    %v333 = vld [vmem:[%s9] sm:$0xff]
    %v334 = vld [vmem:[%s9 + $0x8] sm:$0xff]
    %v335 = vld [vmem:[%s9 + $0x10] sm:$0xff]
    %v336 = vld [vmem:[%s9 + $0x18] sm:$0xff]
    %v337 = vld [vmem:[%s10] sm:$0x1]
    %v339 = vlaneseq
    %v340 = vshrl.u32 %v339, 7
    %v341 = vsub.s32 0, %v340
    %v342 = vrot.slane %v337, %v341
    %v345 = vsel %vm159, %v144, 0
    %v348 = vsel %vm159, %v145, 0
    %350 = vmatprep.subr.mxu0 0.0
    %351 = vmatpush1.msra.mxu0 0.0
    %352 = vmatprep.subr.mxu0 0.0
    %353 = vmatpush1.msra.mxu0 0.0
    %354 = vmatprep.subr.mxu0 0.0
    %355 = vmatpush1.msra.mxu0 0.0
    %356 = vmatprep.subr.mxu0 0.0
    %357 = vmatpush1.msra.mxu0 0.0
    %358 = vmatprep.subr.mxu0 0.0
    %359 = vmatpush1.msra.mxu0 0.0
    %360 = vmatprep.subr.mxu0 0.0
    %361 = vmatpush1.msra.mxu0 0.0
    %362 = vmatprep.subr.mxu0 0.0
    %363 = vmatpush1.msra.mxu0 0.0
    %364 = vmatprep.subr.mxu0 0.0
    %365 = vmatpush1.msra.mxu0 0.0
    %366 = vmatprep.subr.mxu0 0.0
    %367 = vmatpush1.msra.mxu0 0.0
    %368 = vmatprep.subr.mxu0 0.0
    %369 = vmatpush1.msra.mxu0 0.0
    %370 = vmatprep.subr.mxu0 0.0
    %371 = vmatpush1.msra.mxu0 0.0
    %372 = vmatprep.subr.mxu0 0.0
    %373 = vmatpush1.msra.mxu0 0.0
    %374 = vmatprep.subr.mxu0 0.0
    %375 = vmatpush1.msra.mxu0 %v336
    %376 = vmatprep.subr.mxu0 0.0
    %377 = vmatpush1.msra.mxu0 %v335
    %378 = vmatprep.subr.mxu0 0.0
    %379 = vmatpush1.msra.mxu0 %v334
    %380 = vmatprep.subr.mxu0 0.0
    %381 = vmatpush1.msra.mxu0 %v333
    %382 = vmatprep.subr.mxu0 0.0
    %383 = vmatpush2.msra.mxu0 0.0
    %384 = vmatprep.subr.mxu0 0.0
    %385 = vmatpush2.msra.mxu0 0.0
    %386 = vmatprep.subr.mxu0 0.0
    %387 = vmatpush2.msra.mxu0 0.0
    %388 = vmatprep.subr.mxu0 0.0
    %389 = vmatpush2.msra.mxu0 0.0
    %390 = vmatprep.subr.mxu0 0.0
    %391 = vmatpush2.msra.mxu0 0.0
    %392 = vmatprep.subr.mxu0 0.0
    %393 = vmatpush2.msra.mxu0 0.0
    %394 = vmatprep.subr.mxu0 0.0
    %395 = vmatpush2.msra.mxu0 0.0
    %396 = vmatprep.subr.mxu0 0.0
    %397 = vmatpush2.msra.mxu0 0.0
    %398 = vmatprep.subr.mxu0 0.0
    %399 = vmatpush2.msra.mxu0 0.0
    %400 = vmatprep.subr.mxu0 0.0
    %401 = vmatpush2.msra.mxu0 0.0
    %402 = vmatprep.subr.mxu0 0.0
    %403 = vmatpush2.msra.mxu0 0.0
    %404 = vmatprep.subr.mxu0 0.0
    %405 = vmatpush2.msra.mxu0 0.0
    %406 = vmatprep.subr.mxu0 0.0
    %407 = vmatpush2.msra.mxu0 0.0
    %408 = vmatprep.subr.mxu0 0.0
    %409 = vmatpush2.msra.mxu0 0.0
    %410 = vmatprep.subr.mxu0 0.0
    %411 = vmatpush2.msra.mxu0 0.0
    %412 = vmatprep.subr.mxu0 0.0
    %413 = vmatpush2.msra.mxu0 0.0
    %414 = vmatprep.mubr.f32.mxu0 0.0
    %415 = vmatmul.mubr.f32.gmra.mxu0 %v345
    %v416 = vpop.f32.mrf.mxu0
    %v417 = vadd.f32 %v342, %v416
    %v418 = vpop.f32.mrf.mxu0
    %419 = vmatprep.mubr.f32.mxu0 0.0
    %420 = vmatmul.mubr.f32.gmra.mxu0 %v348
    %v421 = vpop.f32.mrf.mxu0
    %v422 = vadd.f32 %v342, %v421
    %v423 = vpop.f32.mrf.mxu0
    %424 = vdwg.mxu0
    %vm425 = vcmp.gt.f32.partialorder %v233, 0.0
    %vm426 = vcmp.gt.f32.partialorder %v238, 0.0
    %v427 = vadd.f32 %v233, 1.0
    %v428 = vadd.f32 %v238, 1.0
    %v429 = vmin.f32 %v233, 0.0
    %v430 = vmin.f32 %v238, 0.0
    %v431 = vmul.f32 %v429, 1.442695
    %v432 = vpow.pop %v431
    %v433 = vmul.f32 %v430, 1.442695
    %v434 = vpow.pop %v433
    %v435 = vsel %vm425, %v427, %v432
    %v436 = vsel %vm426, %v428, %v434
    %vm437 = vcmp.gt.f32.partialorder %v325, 0.0
    %vm438 = vcmp.gt.f32.partialorder %v330, 0.0
    %v439 = vadd.f32 %v325, 1.0
    %v440 = vadd.f32 %v330, 1.0
    %v441 = vmin.f32 %v325, 0.0
    %v442 = vmin.f32 %v330, 0.0
    %v443 = vmul.f32 %v441, 1.442695
    %v444 = vpow.pop %v443
    %v445 = vmul.f32 %v442, 1.442695
    %v446 = vpow.pop %v445
    %v447 = vsel %vm437, %v439, %v444
    %v448 = vsel %vm438, %v440, %v446
    %450 = vset.pattern.permute.xlu0 0
    %451 = vperm.xlu0 %450, %v146
    %v452 = vpop.permute.xlu0 %451
    %455 = vset.pattern.permute.xlu0 0
    %456 = vperm.xlu0 %455, %v147
    %v457 = vpop.permute.xlu0 %456
    %v459 = vmul.f32 %v447, %v452
    %v460 = vmul.f32 %v448, %v457
    %v461 = vld [vmem:[#allocation8] sm:$0xff]
    %v462 = vld [vmem:[#allocation8 + $0x8] sm:$0xff]
    %v463 = vld [vmem:[#allocation8 + $0x10] sm:$0xff]
    %v464 = vld [vmem:[#allocation8 + $0x18] sm:$0xff]
    %465 = vxpose.xlu0.b32.start [1/16] %v459, 128
    %466 = vxpose.xlu0.b32.cont [2/16] 0.0, 128
    %467 = vxpose.xlu0.b32.cont [3/16] 0.0, 128
    %468 = vxpose.xlu0.b32.cont [4/16] 0.0, 128
    %469 = vxpose.xlu0.b32.cont [5/16] 0.0, 128
    %470 = vxpose.xlu0.b32.cont [6/16] 0.0, 128
    %471 = vxpose.xlu0.b32.cont [7/16] 0.0, 128
    %472 = vxpose.xlu0.b32.cont [8/16] 0.0, 128
    %473 = vxpose.xlu0.b32.cont [9/16] 0.0, 128
    %474 = vxpose.xlu0.b32.cont [10/16] 0.0, 128
    %475 = vxpose.xlu0.b32.cont [11/16] 0.0, 128
    %476 = vxpose.xlu0.b32.cont [12/16] 0.0, 128
    %477 = vxpose.xlu0.b32.cont [13/16] 0.0, 128
    %478 = vxpose.xlu0.b32.cont [14/16] 0.0, 128
    %479 = vxpose.xlu0.b32.cont [15/16] 0.0, 128
    %480 = vxpose.xlu0.b32.end [16/16] 0.0, 128
    %v481 = vpop.trf.xlu0
    %v482 = vpop.trf.xlu0
    %v483 = vpop.trf.xlu0
    %v484 = vpop.trf.xlu0
    %v485 = vpop.trf.xlu0
    %v486 = vpop.trf.xlu0
    %v487 = vpop.trf.xlu0
    %v488 = vpop.trf.xlu0
    %v489 = vpop.trf.xlu0
    %v490 = vpop.trf.xlu0
    %v491 = vpop.trf.xlu0
    %v492 = vpop.trf.xlu0
    %v493 = vpop.trf.xlu0
    %v494 = vpop.trf.xlu0
    %v495 = vpop.trf.xlu0
    %v496 = vpop.trf.xlu0
    %vm497 = vcmask 64512
    %v499 = vsel %vm497, %v481, 0
    %v502 = vsel %vm497, %v482, 0
    %v505 = vsel %vm497, %v483, 0
    %v508 = vsel %vm497, %v484, 0
    %510 = vmatprep.subr.mxu0 0.0
    %511 = vmatpush1.msra.mxu0 0.0
    %512 = vmatprep.subr.mxu0 0.0
    %513 = vmatpush1.msra.mxu0 0.0
    %514 = vmatprep.subr.mxu0 0.0
    %515 = vmatpush1.msra.mxu0 0.0
    %516 = vmatprep.subr.mxu0 0.0
    %517 = vmatpush1.msra.mxu0 0.0
    %518 = vmatprep.subr.mxu0 0.0
    %519 = vmatpush1.msra.mxu0 0.0
    %520 = vmatprep.subr.mxu0 0.0
    %521 = vmatpush1.msra.mxu0 0.0
    %522 = vmatprep.subr.mxu0 0.0
    %523 = vmatpush1.msra.mxu0 0.0
    %524 = vmatprep.subr.mxu0 0.0
    %525 = vmatpush1.msra.mxu0 0.0
    %526 = vmatprep.subr.mxu0 0.0
    %527 = vmatpush1.msra.mxu0 0.0
    %528 = vmatprep.subr.mxu0 0.0
    %529 = vmatpush1.msra.mxu0 0.0
    %530 = vmatprep.subr.mxu0 0.0
    %531 = vmatpush1.msra.mxu0 0.0
    %532 = vmatprep.subr.mxu0 0.0
    %533 = vmatpush1.msra.mxu0 0.0
    %534 = vmatprep.subr.mxu0 0.0
    %535 = vmatpush1.msra.mxu0 0.0
    %536 = vmatprep.subr.mxu0 0.0
    %537 = vmatpush1.msra.mxu0 0.0
    %538 = vmatprep.subr.mxu0 0.0
    %539 = vmatpush1.msra.mxu0 0.0
    %540 = vmatprep.subr.mxu0 0.0
    %541 = vmatpush1.msra.mxu0 %v417
    %542 = vmatprep.subr.mxu0 0.0
    %543 = vmatpush2.msra.mxu0 0.0
    %544 = vmatprep.subr.mxu0 0.0
    %545 = vmatpush2.msra.mxu0 0.0
    %546 = vmatprep.subr.mxu0 0.0
    %547 = vmatpush2.msra.mxu0 0.0
    %548 = vmatprep.subr.mxu0 0.0
    %549 = vmatpush2.msra.mxu0 0.0
    %550 = vmatprep.subr.mxu0 0.0
    %551 = vmatpush2.msra.mxu0 0.0
    %552 = vmatprep.subr.mxu0 0.0
    %553 = vmatpush2.msra.mxu0 0.0
    %554 = vmatprep.subr.mxu0 0.0
    %555 = vmatpush2.msra.mxu0 0.0
    %556 = vmatprep.subr.mxu0 0.0
    %557 = vmatpush2.msra.mxu0 0.0
    %558 = vmatprep.subr.mxu0 0.0
    %559 = vmatpush2.msra.mxu0 0.0
    %560 = vmatprep.subr.mxu0 0.0
    %561 = vmatpush2.msra.mxu0 0.0
    %562 = vmatprep.subr.mxu0 0.0
    %563 = vmatpush2.msra.mxu0 0.0
    %564 = vmatprep.subr.mxu0 0.0
    %565 = vmatpush2.msra.mxu0 0.0
    %566 = vmatprep.subr.mxu0 0.0
    %567 = vmatpush2.msra.mxu0 0.0
    %568 = vmatprep.subr.mxu0 0.0
    %569 = vmatpush2.msra.mxu0 0.0
    %570 = vmatprep.subr.mxu0 0.0
    %571 = vmatpush2.msra.mxu0 0.0
    %572 = vmatprep.subr.mxu0 0.0
    %573 = vmatpush2.msra.mxu0 0.0
    %574 = vmatprep.mubr.f32.mxu0 0.0
    %575 = vmatmul.mubr.f32.gmra.mxu0 %v499
    %v576 = vpop.f32.mrf.mxu0
    %v577 = vadd.f32 0.0, %v576
    %v578 = vpop.f32.mrf.mxu0
    %579 = vmatprep.mubr.f32.mxu0 0.0
    %580 = vmatmul.mubr.f32.gmra.mxu0 %v502
    %v581 = vpop.f32.mrf.mxu0
    %v582 = vadd.f32 0.0, %v581
    %v583 = vpop.f32.mrf.mxu0
    %584 = vmatprep.mubr.f32.mxu0 0.0
    %585 = vmatmul.mubr.f32.gmra.mxu0 %v505
    %v586 = vpop.f32.mrf.mxu0
    %v587 = vadd.f32 0.0, %v586
    %v588 = vpop.f32.mrf.mxu0
    %589 = vmatprep.mubr.f32.mxu0 0.0
    %590 = vmatmul.mubr.f32.gmra.mxu0 %v508
    %v591 = vpop.f32.mrf.mxu0
    %v592 = vadd.f32 0.0, %v591
    %v593 = vpop.f32.mrf.mxu0
    %594 = vdwg.mxu0
    %v595 = vmul.f32 %v577, %v461
    %v596 = vmul.f32 %v582, %v462
    %v597 = vmul.f32 %v587, %v463
    %v598 = vmul.f32 %v592, %v464
    %v600 = vsel %vm159, %v435, 0
    %602 = vmatprep.subr.mxu0 0.0
    %603 = vmatpush1.msra.mxu0 0.0
    %604 = vmatprep.subr.mxu0 0.0
    %605 = vmatpush1.msra.mxu0 0.0
    %606 = vmatprep.subr.mxu0 0.0
    %607 = vmatpush1.msra.mxu0 0.0
    %608 = vmatprep.subr.mxu0 0.0
    %609 = vmatpush1.msra.mxu0 0.0
    %610 = vmatprep.subr.mxu0 0.0
    %611 = vmatpush1.msra.mxu0 0.0
    %612 = vmatprep.subr.mxu0 0.0
    %613 = vmatpush1.msra.mxu0 0.0
    %614 = vmatprep.subr.mxu0 0.0
    %615 = vmatpush1.msra.mxu0 0.0
    %616 = vmatprep.subr.mxu0 0.0
    %617 = vmatpush1.msra.mxu0 0.0
    %618 = vmatprep.subr.mxu0 0.0
    %619 = vmatpush1.msra.mxu0 0.0
    %620 = vmatprep.subr.mxu0 0.0
    %621 = vmatpush1.msra.mxu0 0.0
    %622 = vmatprep.subr.mxu0 0.0
    %623 = vmatpush1.msra.mxu0 0.0
    %624 = vmatprep.subr.mxu0 0.0
    %625 = vmatpush1.msra.mxu0 0.0
    %626 = vmatprep.subr.mxu0 0.0
    %627 = vmatpush1.msra.mxu0 %v598
    %628 = vmatprep.subr.mxu0 0.0
    %629 = vmatpush1.msra.mxu0 %v597
    %630 = vmatprep.subr.mxu0 0.0
    %631 = vmatpush1.msra.mxu0 %v596
    %632 = vmatprep.subr.mxu0 0.0
    %633 = vmatpush1.msra.mxu0 %v595
    %634 = vmatprep.subr.mxu0 0.0
    %635 = vmatpush2.msra.mxu0 0.0
    %636 = vmatprep.subr.mxu0 0.0
    %637 = vmatpush2.msra.mxu0 0.0
    %638 = vmatprep.subr.mxu0 0.0
    %639 = vmatpush2.msra.mxu0 0.0
    %640 = vmatprep.subr.mxu0 0.0
    %641 = vmatpush2.msra.mxu0 0.0
    %642 = vmatprep.subr.mxu0 0.0
    %643 = vmatpush2.msra.mxu0 0.0
    %644 = vmatprep.subr.mxu0 0.0
    %645 = vmatpush2.msra.mxu0 0.0
    %646 = vmatprep.subr.mxu0 0.0
    %647 = vmatpush2.msra.mxu0 0.0
    %648 = vmatprep.subr.mxu0 0.0
    %649 = vmatpush2.msra.mxu0 0.0
    %650 = vmatprep.subr.mxu0 0.0
    %651 = vmatpush2.msra.mxu0 0.0
    %652 = vmatprep.subr.mxu0 0.0
    %653 = vmatpush2.msra.mxu0 0.0
    %654 = vmatprep.subr.mxu0 0.0
    %655 = vmatpush2.msra.mxu0 0.0
    %656 = vmatprep.subr.mxu0 0.0
    %657 = vmatpush2.msra.mxu0 0.0
    %658 = vmatprep.subr.mxu0 0.0
    %659 = vmatpush2.msra.mxu0 0.0
    %660 = vmatprep.subr.mxu0 0.0
    %661 = vmatpush2.msra.mxu0 0.0
    %662 = vmatprep.subr.mxu0 0.0
    %663 = vmatpush2.msra.mxu0 0.0
    %664 = vmatprep.subr.mxu0 0.0
    %665 = vmatpush2.msra.mxu0 0.0
    %666 = vmatprep.mubr.f32.mxu0 0.0
    %667 = vmatmul.mubr.f32.gmra.mxu0 %v600
    %v668 = vpop.f32.mrf.mxu0
    %v669 = vadd.f32 0.0, %v668
    %v670 = vpop.f32.mrf.mxu0
    %671 = vdwg.mxu0
    %672 = vxpose.xlu0.b32.start [1/16] %v460, 128
    %673 = vxpose.xlu0.b32.cont [2/16] 0.0, 128
    %674 = vxpose.xlu0.b32.cont [3/16] 0.0, 128
    %675 = vxpose.xlu0.b32.cont [4/16] 0.0, 128
    %676 = vxpose.xlu0.b32.cont [5/16] 0.0, 128
    %677 = vxpose.xlu0.b32.cont [6/16] 0.0, 128
    %678 = vxpose.xlu0.b32.cont [7/16] 0.0, 128
    %679 = vxpose.xlu0.b32.cont [8/16] 0.0, 128
    %680 = vxpose.xlu0.b32.cont [9/16] 0.0, 128
    %681 = vxpose.xlu0.b32.cont [10/16] 0.0, 128
    %682 = vxpose.xlu0.b32.cont [11/16] 0.0, 128
    %683 = vxpose.xlu0.b32.cont [12/16] 0.0, 128
    %684 = vxpose.xlu0.b32.cont [13/16] 0.0, 128
    %685 = vxpose.xlu0.b32.cont [14/16] 0.0, 128
    %686 = vxpose.xlu0.b32.cont [15/16] 0.0, 128
    %687 = vxpose.xlu0.b32.end [16/16] 0.0, 128
    %v688 = vpop.trf.xlu0
    %v689 = vpop.trf.xlu0
    %v690 = vpop.trf.xlu0
    %v691 = vpop.trf.xlu0
    %v692 = vpop.trf.xlu0
    %v693 = vpop.trf.xlu0
    %v694 = vpop.trf.xlu0
    %v695 = vpop.trf.xlu0
    %v696 = vpop.trf.xlu0
    %v697 = vpop.trf.xlu0
    %v698 = vpop.trf.xlu0
    %v699 = vpop.trf.xlu0
    %v700 = vpop.trf.xlu0
    %v701 = vpop.trf.xlu0
    %v702 = vpop.trf.xlu0
    %v703 = vpop.trf.xlu0
    %v705 = vsel %vm497, %v688, 0
    %v708 = vsel %vm497, %v689, 0
    %v711 = vsel %vm497, %v690, 0
    %v714 = vsel %vm497, %v691, 0
    %716 = vmatprep.subr.mxu0 0.0
    %717 = vmatpush1.msra.mxu0 0.0
    %718 = vmatprep.subr.mxu0 0.0
    %719 = vmatpush1.msra.mxu0 0.0
    %720 = vmatprep.subr.mxu0 0.0
    %721 = vmatpush1.msra.mxu0 0.0
    %722 = vmatprep.subr.mxu0 0.0
    %723 = vmatpush1.msra.mxu0 0.0
    %724 = vmatprep.subr.mxu0 0.0
    %725 = vmatpush1.msra.mxu0 0.0
    %726 = vmatprep.subr.mxu0 0.0
    %727 = vmatpush1.msra.mxu0 0.0
    %728 = vmatprep.subr.mxu0 0.0
    %729 = vmatpush1.msra.mxu0 0.0
    %730 = vmatprep.subr.mxu0 0.0
    %731 = vmatpush1.msra.mxu0 0.0
    %732 = vmatprep.subr.mxu0 0.0
    %733 = vmatpush1.msra.mxu0 0.0
    %734 = vmatprep.subr.mxu0 0.0
    %735 = vmatpush1.msra.mxu0 0.0
    %736 = vmatprep.subr.mxu0 0.0
    %737 = vmatpush1.msra.mxu0 0.0
    %738 = vmatprep.subr.mxu0 0.0
    %739 = vmatpush1.msra.mxu0 0.0
    %740 = vmatprep.subr.mxu0 0.0
    %741 = vmatpush1.msra.mxu0 0.0
    %742 = vmatprep.subr.mxu0 0.0
    %743 = vmatpush1.msra.mxu0 0.0
    %744 = vmatprep.subr.mxu0 0.0
    %745 = vmatpush1.msra.mxu0 0.0
    %746 = vmatprep.subr.mxu0 0.0
    %747 = vmatpush1.msra.mxu0 %v422
    %748 = vmatprep.subr.mxu0 0.0
    %749 = vmatpush2.msra.mxu0 0.0
    %750 = vmatprep.subr.mxu0 0.0
    %751 = vmatpush2.msra.mxu0 0.0
    %752 = vmatprep.subr.mxu0 0.0
    %753 = vmatpush2.msra.mxu0 0.0
    %754 = vmatprep.subr.mxu0 0.0
    %755 = vmatpush2.msra.mxu0 0.0
    %756 = vmatprep.subr.mxu0 0.0
    %757 = vmatpush2.msra.mxu0 0.0
    %758 = vmatprep.subr.mxu0 0.0
    %759 = vmatpush2.msra.mxu0 0.0
    %760 = vmatprep.subr.mxu0 0.0
    %761 = vmatpush2.msra.mxu0 0.0
    %762 = vmatprep.subr.mxu0 0.0
    %763 = vmatpush2.msra.mxu0 0.0
    %764 = vmatprep.subr.mxu0 0.0
    %765 = vmatpush2.msra.mxu0 0.0
    %766 = vmatprep.subr.mxu0 0.0
    %767 = vmatpush2.msra.mxu0 0.0
    %768 = vmatprep.subr.mxu0 0.0
    %769 = vmatpush2.msra.mxu0 0.0
    %770 = vmatprep.subr.mxu0 0.0
    %771 = vmatpush2.msra.mxu0 0.0
    %772 = vmatprep.subr.mxu0 0.0
    %773 = vmatpush2.msra.mxu0 0.0
    %774 = vmatprep.subr.mxu0 0.0
    %775 = vmatpush2.msra.mxu0 0.0
    %776 = vmatprep.subr.mxu0 0.0
    %777 = vmatpush2.msra.mxu0 0.0
    %778 = vmatprep.subr.mxu0 0.0
    %779 = vmatpush2.msra.mxu0 0.0
    %780 = vmatprep.mubr.f32.mxu0 0.0
    %781 = vmatmul.mubr.f32.gmra.mxu0 %v705
    %v782 = vpop.f32.mrf.mxu0
    %v783 = vadd.f32 0.0, %v782
    %v784 = vpop.f32.mrf.mxu0
    %785 = vmatprep.mubr.f32.mxu0 0.0
    %786 = vmatmul.mubr.f32.gmra.mxu0 %v708
    %v787 = vpop.f32.mrf.mxu0
    %v788 = vadd.f32 0.0, %v787
    %v789 = vpop.f32.mrf.mxu0
    %790 = vmatprep.mubr.f32.mxu0 0.0
    %791 = vmatmul.mubr.f32.gmra.mxu0 %v711
    %v792 = vpop.f32.mrf.mxu0
    %v793 = vadd.f32 0.0, %v792
    %v794 = vpop.f32.mrf.mxu0
    %795 = vmatprep.mubr.f32.mxu0 0.0
    %796 = vmatmul.mubr.f32.gmra.mxu0 %v714
    %v797 = vpop.f32.mrf.mxu0
    %v798 = vadd.f32 0.0, %v797
    %v799 = vpop.f32.mrf.mxu0
    %800 = vdwg.mxu0
    %v801 = vmul.f32 %v783, %v461
    %v802 = vmul.f32 %v788, %v462
    %v803 = vmul.f32 %v793, %v463
    %v804 = vmul.f32 %v798, %v464
    %v806 = vsel %vm159, %v436, 0
    %808 = vmatprep.subr.mxu0 0.0
    %809 = vmatpush1.msra.mxu0 0.0
    %810 = vmatprep.subr.mxu0 0.0
    %811 = vmatpush1.msra.mxu0 0.0
    %812 = vmatprep.subr.mxu0 0.0
    %813 = vmatpush1.msra.mxu0 0.0
    %814 = vmatprep.subr.mxu0 0.0
    %815 = vmatpush1.msra.mxu0 0.0
    %816 = vmatprep.subr.mxu0 0.0
    %817 = vmatpush1.msra.mxu0 0.0
    %818 = vmatprep.subr.mxu0 0.0
    %819 = vmatpush1.msra.mxu0 0.0
    %820 = vmatprep.subr.mxu0 0.0
    %821 = vmatpush1.msra.mxu0 0.0
    %822 = vmatprep.subr.mxu0 0.0
    %823 = vmatpush1.msra.mxu0 0.0
    %824 = vmatprep.subr.mxu0 0.0
    %825 = vmatpush1.msra.mxu0 0.0
    %826 = vmatprep.subr.mxu0 0.0
    %827 = vmatpush1.msra.mxu0 0.0
    %828 = vmatprep.subr.mxu0 0.0
    %829 = vmatpush1.msra.mxu0 0.0
    %830 = vmatprep.subr.mxu0 0.0
    %831 = vmatpush1.msra.mxu0 0.0
    %832 = vmatprep.subr.mxu0 0.0
    %833 = vmatpush1.msra.mxu0 %v804
    %834 = vmatprep.subr.mxu0 0.0
    %835 = vmatpush1.msra.mxu0 %v803
    %836 = vmatprep.subr.mxu0 0.0
    %837 = vmatpush1.msra.mxu0 %v802
    %838 = vmatprep.subr.mxu0 0.0
    %839 = vmatpush1.msra.mxu0 %v801
    %840 = vmatprep.subr.mxu0 0.0
    %841 = vmatpush2.msra.mxu0 0.0
    %842 = vmatprep.subr.mxu0 0.0
    %843 = vmatpush2.msra.mxu0 0.0
    %844 = vmatprep.subr.mxu0 0.0
    %845 = vmatpush2.msra.mxu0 0.0
    %846 = vmatprep.subr.mxu0 0.0
    %847 = vmatpush2.msra.mxu0 0.0
    %848 = vmatprep.subr.mxu0 0.0
    %849 = vmatpush2.msra.mxu0 0.0
    %850 = vmatprep.subr.mxu0 0.0
    %851 = vmatpush2.msra.mxu0 0.0
    %852 = vmatprep.subr.mxu0 0.0
    %853 = vmatpush2.msra.mxu0 0.0
    %854 = vmatprep.subr.mxu0 0.0
    %855 = vmatpush2.msra.mxu0 0.0
    %856 = vmatprep.subr.mxu0 0.0
    %857 = vmatpush2.msra.mxu0 0.0
    %858 = vmatprep.subr.mxu0 0.0
    %859 = vmatpush2.msra.mxu0 0.0
    %860 = vmatprep.subr.mxu0 0.0
    %861 = vmatpush2.msra.mxu0 0.0
    %862 = vmatprep.subr.mxu0 0.0
    %863 = vmatpush2.msra.mxu0 0.0
    %864 = vmatprep.subr.mxu0 0.0
    %865 = vmatpush2.msra.mxu0 0.0
    %866 = vmatprep.subr.mxu0 0.0
    %867 = vmatpush2.msra.mxu0 0.0
    %868 = vmatprep.subr.mxu0 0.0
    %869 = vmatpush2.msra.mxu0 0.0
    %870 = vmatprep.subr.mxu0 0.0
    %871 = vmatpush2.msra.mxu0 0.0
    %872 = vmatprep.mubr.f32.mxu0 0.0
    %873 = vmatmul.mubr.f32.gmra.mxu0 %v806
    %v874 = vpop.f32.mrf.mxu0
    %v875 = vadd.f32 0.0, %v874
    %v876 = vpop.f32.mrf.mxu0
    %877 = vdwg.mxu0
    %v878 = vsel %vm159, %v459, 0.0
    %v879 = vrot.slane %v878, 4
    %v880 = vadd.f32 %v878, %v879
    %v881 = vrot.slane %v880, 2
    %v882 = vadd.f32 %v880, %v881
    %v883 = vrot.slane %v882, 1
    %v884 = vadd.f32 %v882, %v883
    %v885 = vsel %vm159, %v460, 0.0
    %v886 = vrot.slane %v885, 4
    %v887 = vadd.f32 %v885, %v886
    %v888 = vrot.slane %v887, 2
    %v889 = vadd.f32 %v887, %v888
    %v890 = vrot.slane %v889, 1
    %v891 = vadd.f32 %v889, %v890
    %v892 = vmul.f32 %v435, %v884
    %v893 = vmul.f32 %v436, %v891
    %v895 = vsel %vm159, %v892, 0
    %v898 = vsel %vm159, %v893, 0
    %900 = vmatprep.subr.mxu0 0.0
    %901 = vmatpush1.msra.mxu0 0.0
    %902 = vmatprep.subr.mxu0 0.0
    %903 = vmatpush1.msra.mxu0 0.0
    %904 = vmatprep.subr.mxu0 0.0
    %905 = vmatpush1.msra.mxu0 0.0
    %906 = vmatprep.subr.mxu0 0.0
    %907 = vmatpush1.msra.mxu0 0.0
    %908 = vmatprep.subr.mxu0 0.0
    %909 = vmatpush1.msra.mxu0 0.0
    %910 = vmatprep.subr.mxu0 0.0
    %911 = vmatpush1.msra.mxu0 0.0
    %912 = vmatprep.subr.mxu0 0.0
    %913 = vmatpush1.msra.mxu0 0.0
    %914 = vmatprep.subr.mxu0 0.0
    %915 = vmatpush1.msra.mxu0 0.0
    %916 = vmatprep.subr.mxu0 0.0
    %917 = vmatpush1.msra.mxu0 0.0
    %918 = vmatprep.subr.mxu0 0.0
    %919 = vmatpush1.msra.mxu0 0.0
    %920 = vmatprep.subr.mxu0 0.0
    %921 = vmatpush1.msra.mxu0 0.0
    %922 = vmatprep.subr.mxu0 0.0
    %923 = vmatpush1.msra.mxu0 0.0
    %924 = vmatprep.subr.mxu0 0.0
    %925 = vmatpush1.msra.mxu0 %v464
    %926 = vmatprep.subr.mxu0 0.0
    %927 = vmatpush1.msra.mxu0 %v463
    %928 = vmatprep.subr.mxu0 0.0
    %929 = vmatpush1.msra.mxu0 %v462
    %930 = vmatprep.subr.mxu0 0.0
    %931 = vmatpush1.msra.mxu0 %v461
    %932 = vmatprep.subr.mxu0 0.0
    %933 = vmatpush2.msra.mxu0 0.0
    %934 = vmatprep.subr.mxu0 0.0
    %935 = vmatpush2.msra.mxu0 0.0
    %936 = vmatprep.subr.mxu0 0.0
    %937 = vmatpush2.msra.mxu0 0.0
    %938 = vmatprep.subr.mxu0 0.0
    %939 = vmatpush2.msra.mxu0 0.0
    %940 = vmatprep.subr.mxu0 0.0
    %941 = vmatpush2.msra.mxu0 0.0
    %942 = vmatprep.subr.mxu0 0.0
    %943 = vmatpush2.msra.mxu0 0.0
    %944 = vmatprep.subr.mxu0 0.0
    %945 = vmatpush2.msra.mxu0 0.0
    %946 = vmatprep.subr.mxu0 0.0
    %947 = vmatpush2.msra.mxu0 0.0
    %948 = vmatprep.subr.mxu0 0.0
    %949 = vmatpush2.msra.mxu0 0.0
    %950 = vmatprep.subr.mxu0 0.0
    %951 = vmatpush2.msra.mxu0 0.0
    %952 = vmatprep.subr.mxu0 0.0
    %953 = vmatpush2.msra.mxu0 0.0
    %954 = vmatprep.subr.mxu0 0.0
    %955 = vmatpush2.msra.mxu0 0.0
    %956 = vmatprep.subr.mxu0 0.0
    %957 = vmatpush2.msra.mxu0 0.0
    %958 = vmatprep.subr.mxu0 0.0
    %959 = vmatpush2.msra.mxu0 0.0
    %960 = vmatprep.subr.mxu0 0.0
    %961 = vmatpush2.msra.mxu0 0.0
    %962 = vmatprep.subr.mxu0 0.0
    %963 = vmatpush2.msra.mxu0 0.0
    %964 = vmatprep.mubr.f32.mxu0 0.0
    %965 = vmatmul.mubr.f32.gmra.mxu0 %v895
    %v966 = vpop.f32.mrf.mxu0
    %v967 = vadd.f32 1e-06, %v966
    %v968 = vpop.f32.mrf.mxu0
    %969 = vmatprep.mubr.f32.mxu0 0.0
    %970 = vmatmul.mubr.f32.gmra.mxu0 %v898
    %v971 = vpop.f32.mrf.mxu0
    %v972 = vadd.f32 1e-06, %v971
    %v973 = vpop.f32.mrf.mxu0
    %974 = vdwg.mxu0
    %v975 = vrcp.pop %v967
    %v976 = vrcp.pop %v972
    %v977 = vmul.f32 %v669, %v975
    %v978 = vmul.f32 %v875, %v976
    %v979 = vld [vmem:[#allocation13] sm:$0xff]
    %v980 = vld [vmem:[#allocation13 + $0x8] sm:$0xff]
    %v981 = vld [vmem:[#allocation13 + $0x10] sm:$0xff]
    %v982 = vld [vmem:[#allocation13 + $0x18] sm:$0xff]
    %v983 = vld [vmem:[%s12] sm:$0x1]
    %v985 = vlaneseq
    %v986 = vshrl.u32 %v985, 7
    %v987 = vsub.s32 0, %v986
    %v988 = vrot.slane %v983, %v987
    %v991 = vsel %vm159, %v977, 0
    %v994 = vsel %vm159, %v978, 0
    %996 = vmatprep.subr.mxu0 0.0
    %997 = vmatpush1.msra.mxu0 0.0
    %998 = vmatprep.subr.mxu0 0.0
    %999 = vmatpush1.msra.mxu0 0.0
    %1000 = vmatprep.subr.mxu0 0.0
    %1001 = vmatpush1.msra.mxu0 0.0
    %1002 = vmatprep.subr.mxu0 0.0
    %1003 = vmatpush1.msra.mxu0 0.0
    %1004 = vmatprep.subr.mxu0 0.0
    %1005 = vmatpush1.msra.mxu0 0.0
    %1006 = vmatprep.subr.mxu0 0.0
    %1007 = vmatpush1.msra.mxu0 0.0
    %1008 = vmatprep.subr.mxu0 0.0
    %1009 = vmatpush1.msra.mxu0 0.0
    %1010 = vmatprep.subr.mxu0 0.0
    %1011 = vmatpush1.msra.mxu0 0.0
    %1012 = vmatprep.subr.mxu0 0.0
    %1013 = vmatpush1.msra.mxu0 0.0
    %1014 = vmatprep.subr.mxu0 0.0
    %1015 = vmatpush1.msra.mxu0 0.0
    %1016 = vmatprep.subr.mxu0 0.0
    %1017 = vmatpush1.msra.mxu0 0.0
    %1018 = vmatprep.subr.mxu0 0.0
    %1019 = vmatpush1.msra.mxu0 0.0
    %1020 = vmatprep.subr.mxu0 0.0
    %1021 = vmatpush1.msra.mxu0 %v982
    %1022 = vmatprep.subr.mxu0 0.0
    %1023 = vmatpush1.msra.mxu0 %v981
    %1024 = vmatprep.subr.mxu0 0.0
    %1025 = vmatpush1.msra.mxu0 %v980
    %1026 = vmatprep.subr.mxu0 0.0
    %1027 = vmatpush1.msra.mxu0 %v979
    %1028 = vmatprep.subr.mxu0 0.0
    %1029 = vmatpush2.msra.mxu0 0.0
    %1030 = vmatprep.subr.mxu0 0.0
    %1031 = vmatpush2.msra.mxu0 0.0
    %1032 = vmatprep.subr.mxu0 0.0
    %1033 = vmatpush2.msra.mxu0 0.0
    %1034 = vmatprep.subr.mxu0 0.0
    %1035 = vmatpush2.msra.mxu0 0.0
    %1036 = vmatprep.subr.mxu0 0.0
    %1037 = vmatpush2.msra.mxu0 0.0
    %1038 = vmatprep.subr.mxu0 0.0
    %1039 = vmatpush2.msra.mxu0 0.0
    %1040 = vmatprep.subr.mxu0 0.0
    %1041 = vmatpush2.msra.mxu0 0.0
    %1042 = vmatprep.subr.mxu0 0.0
    %1043 = vmatpush2.msra.mxu0 0.0
    %1044 = vmatprep.subr.mxu0 0.0
    %1045 = vmatpush2.msra.mxu0 0.0
    %1046 = vmatprep.subr.mxu0 0.0
    %1047 = vmatpush2.msra.mxu0 0.0
    %1048 = vmatprep.subr.mxu0 0.0
    %1049 = vmatpush2.msra.mxu0 0.0
    %1050 = vmatprep.subr.mxu0 0.0
    %1051 = vmatpush2.msra.mxu0 0.0
    %1052 = vmatprep.subr.mxu0 0.0
    %1053 = vmatpush2.msra.mxu0 0.0
    %1054 = vmatprep.subr.mxu0 0.0
    %1055 = vmatpush2.msra.mxu0 0.0
    %1056 = vmatprep.subr.mxu0 0.0
    %1057 = vmatpush2.msra.mxu0 0.0
    %1058 = vmatprep.subr.mxu0 0.0
    %1059 = vmatpush2.msra.mxu0 0.0
    %1060 = vmatprep.mubr.f32.mxu0 0.0
    %1061 = vmatmul.mubr.f32.gmra.mxu0 %v991
    %v1062 = vpop.f32.mrf.mxu0
    %v1063 = vadd.f32 %v988, %v1062
    %v1064 = vpop.f32.mrf.mxu0
    %1065 = vmatprep.mubr.f32.mxu0 0.0
    %1066 = vmatmul.mubr.f32.gmra.mxu0 %v994
    %v1067 = vpop.f32.mrf.mxu0
    %v1068 = vadd.f32 %v988, %v1067
    %v1069 = vpop.f32.mrf.mxu0
    %1070 = vdwg.mxu0
    %1071 = vst.msk [vmem:[#allocation14] sm:$0xff] %vm159, %v1063
    %1072 = vst.msk [vmem:[#allocation14 + $0x8] sm:$0xff] %vm159, %v1068
    // Predicated region
    $region82: #{tpu_custom_call.1} parent=1 // pred_check
      _
    $region83: #{tpu_custom_call.1} parent=1 // pred_check_branch
      %1074 = sbr.rel (0) target = $region85
    $region84: #{tpu_custom_call.1} parent=1 // pred_region
      %s1076 = ssub.s32 256, 256
      %1077 = vsyncadd [#allocation4], %s1076
      %s1078 = sshll.u32 [#allocation14], 4
      %s1079 = int_to_ptr.vmem [resolvable:$true] %s1078
      %1084 = dma.vmem_to_hbm [thread:$0]  %s1079, 256, %s13, [#allocation4], 128, 128, 8
    $region85: #{tpu_custom_call.1} parent=1 // pred_fallthru
      _
    // Predicated region
    $region86: #{tpu_custom_call.1} parent=1 // pred_check
      _
    $region87: #{tpu_custom_call.1} parent=1 // pred_check_branch
      %1086 = sbr.rel (0) target = $region89
    $region88: #{tpu_custom_call.1} parent=1 // pred_region
      %1087 = dma.done [#allocation4], 256
    $region89: #{tpu_custom_call.1} parent=1 // pred_fallthru
      _
    %1088 = vsyncpa [#allocation3], 1
    %1089 = vsyncpa [#allocation6], 1
    %1090 = vsyncpa [#allocation9], 1
    %1091 = vsyncpa [#allocation12], 1
    %1092 = vsyncpa [#allocation4], 1

</llo_original>
